<compile_context>
chip_gen: v6e
topology: v6e:2x2x1
jax: 0.10.0
libtpu: 0.0.40
codegen_flags: <defaults>
</compile_context>

<pallas_src>
import functools

import jax
import jax.numpy as jnp
from jax.experimental import pallas as pl
from jax.experimental.pallas import tpu as pltpu


_LANES = 512            # lane-dense slab width (multiple of 128)
_MAX_BLOCK_ROWS = 1024  # 1024 x 512 x 4B = 2 MiB per f32 block


def _round_up(a, b):
    return ((a + b - 1) // b) * b


def _yrange_kernel(x_ref, o_ref, *, y_lo, y_hi, compute_dtype):
    x = x_ref[...].astype(compute_dtype)
    y = jax.nn.sigmoid(x) * (y_hi - y_lo) + y_lo
    o_ref[...] = y.astype(o_ref.dtype)


def yrange(x, y_range):
    """Apply YRange elementwise: sigmoid(x) * (hi - lo) + lo."""
    y_lo, y_hi = float(y_range[0]), float(y_range[1])
    orig_shape = x.shape
    n = x.size
    if n == 0:
        return x  # degenerate empty input: nothing to compute

    itemsize = jnp.dtype(x.dtype).itemsize
    # Sublane alignment for non-full blocks: 8 rows (4B), 16 (2B), 32 (1B).
    row_align = max(8, 32 // max(itemsize, 1))

    # Flatten to a lane-dense (rows, _LANES) slab, padding the tail.
    flat = x.reshape(-1)
    padded_n = _round_up(n, _LANES)
    if padded_n != n:
        flat = jnp.pad(flat, (0, padded_n - n))
    rows = padded_n // _LANES
    x2 = flat.reshape(rows, _LANES)

    # Block sizing: ~2 MiB blocks for large inputs; a handful of blocks for
    # medium inputs (so v7x's 2 TensorCores both get work); a single full
    # block for tiny inputs (always a legal block shape).
    if rows > _MAX_BLOCK_ROWS:
        block_rows = _MAX_BLOCK_ROWS
    elif rows >= 4 * row_align:
        block_rows = _round_up(pl.cdiv(rows, 4), row_align)
    else:
        block_rows = rows
    n_blocks = pl.cdiv(rows, block_rows)

    block_bytes = block_rows * _LANES * itemsize
    # in + out, double-buffered (4x block), plus headroom; capped so it fits
    # comfortably inside v7x's 64 MiB physical VMEM.
    vmem_limit = int(min(48 * 2**20, max(16 * 2**20, 8 * block_bytes)))

    compute_dtype = jnp.bfloat16 if x.dtype == jnp.bfloat16 else jnp.float32

    kernel = functools.partial(
        _yrange_kernel, y_lo=y_lo, y_hi=y_hi, compute_dtype=compute_dtype)

    out2 = pl.pallas_call(
        kernel,
        out_shape=jax.ShapeDtypeStruct((rows, _LANES), x.dtype),
        grid=(n_blocks,),
        in_specs=[pl.BlockSpec((block_rows, _LANES), lambda i: (i, 0))],
        out_specs=pl.BlockSpec((block_rows, _LANES), lambda i: (i, 0)),
        compiler_params=pltpu.CompilerParams(
            dimension_semantics=("parallel",),
            vmem_limit_bytes=vmem_limit),
    )(x2)

    out_flat = out2.reshape(-1)
    if padded_n != n:
        out_flat = out_flat[:n]
    return out_flat.reshape(orig_shape)


if __name__ == "__main__":
    key = jax.random.PRNGKey(0)
    y_range = (-1.0, 1.0)

    # Primary check: small NCHW-like f32 input.
    x = jax.random.normal(key, (2, 4, 16, 16), dtype=jnp.float32)
    out = yrange(x, y_range)
    jax.block_until_ready(out)
    ref = jax.nn.sigmoid(x) * (y_range[1] - y_range[0]) + y_range[0]
    assert out.shape == x.shape and out.dtype == x.dtype
    assert jnp.allclose(out, ref, atol=1e-5, rtol=1e-5)

    # Odd shape (exercises the pad-and-slice path).
    x_odd = jax.random.normal(jax.random.PRNGKey(1), (3, 5, 7), dtype=jnp.float32)
    out_odd = yrange(x_odd, (0.0, 5.0))
    jax.block_until_ready(out_odd)
    ref_odd = jax.nn.sigmoid(x_odd) * 5.0
    assert jnp.allclose(out_odd, ref_odd, atol=1e-5, rtol=1e-5)

    # bf16 path (bf16 compute; loose tolerance vs f32 reference).
    x_bf = jax.random.normal(jax.random.PRNGKey(2), (2, 8, 100), dtype=jnp.bfloat16)
    out_bf = yrange(x_bf, y_range)
    jax.block_until_ready(out_bf)
    ref_bf = jax.nn.sigmoid(x_bf.astype(jnp.float32)) * 2.0 - 1.0
    assert out_bf.shape == x_bf.shape and out_bf.dtype == jnp.bfloat16
    assert jnp.allclose(out_bf.astype(jnp.float32), ref_bf, atol=3e-2, rtol=3e-2)

    print("KERNEL_OK")
</pallas_src>

<mosaic_0001>
module attributes {stable_mosaic.version = 11 : i64} {
  func.func @_yrange_kernel(%arg0: i32, %arg1: memref<4x512xf32, #tpu.memory_space<vmem>>, %arg2: memref<4x512xf32, #tpu.memory_space<vmem>>) attributes {dimension_semantics = [#tpu.dimension_semantics<parallel>], iteration_bounds = array<i64: 1>, scalar_prefetch = 0 : i64, scratch_operands = 0 : i64, tpu.core_type = #tpu.core_type<tc>, window_params = [{transform_indices = @transform_0, window_bounds = array<i64: 4, 512>}, {transform_indices = @transform_1, window_bounds = array<i64: 4, 512>}]} {
    %c0 = arith.constant 0 : index
    %c0_0 = arith.constant 0 : index
    %0 = vector.load %arg1[%c0, %c0_0] : memref<4x512xf32, #tpu.memory_space<vmem>>, vector<4x512xf32>
    %1 = arith.negf %0 : vector<4x512xf32>
    %2 = math.exp %1 : vector<4x512xf32>
    %cst = arith.constant 1.000000e+00 : f32
    %3 = vector.broadcast %cst : f32 to vector<4x512xf32>
    %4 = arith.addf %3, %2 : vector<4x512xf32>
    %5 = arith.divf %3, %4 : vector<4x512xf32>
    %cst_1 = arith.constant 2.000000e+00 : f32
    %6 = vector.broadcast %cst_1 : f32 to vector<4x512xf32>
    %7 = arith.mulf %5, %6 : vector<4x512xf32>
    %cst_2 = arith.constant -1.000000e+00 : f32
    %8 = vector.broadcast %cst_2 : f32 to vector<4x512xf32>
    %9 = arith.addf %7, %8 : vector<4x512xf32>
    %c0_3 = arith.constant 0 : index
    %c0_4 = arith.constant 0 : index
    %10 = vector.load %arg2[%c0_3, %c0_4] : memref<4x512xf32, #tpu.memory_space<vmem>>, vector<4x512xf32>
    tpu.vector_store %arg2[%c0_3, %c0_4], %9 {strides = array<i32>} : memref<4x512xf32, #tpu.memory_space<vmem>>, vector<4x512xf32>,
    return
  }
  func.func @transform_0(%arg0: i32) -> (i32, i32) {
    %c0_i32 = arith.constant 0 : i32
    %c0_i32_0 = arith.constant 0 : i32
    return %arg0, %c0_i32 : i32, i32
  }
  func.func @transform_1(%arg0: i32) -> (i32, i32) {
    %c0_i32 = arith.constant 0 : i32
    %c0_i32_0 = arith.constant 0 : i32
    return %arg0, %c0_i32 : i32, i32
  }
}

</mosaic_0001>

<llo_original>
// kernel: tpu_custom_call.1
$region0: #{tpu_custom_call.1}
  #allocation0 [shape = 'u32[]', space=smem, size = 0x4, offset = 0x4, fixed_abs, tag = 'smem constant byte address 0x4 - core index']
  #allocation1 [shape = 'u32[144,128]{1,0:T(1,128)}', space=vmem, size = 0x12000, scoped, tag = 'internal scratch']
  %s0 = inlined_call_operand.hbm [shape: f32[4,512], index: 0, kind: input, shape index: {}]
  %s1 = inlined_call_operand.hbm [shape: f32[4,512], index: 1, kind: output, shape index: {}]
  %s2 = sld [smem:[#allocation0]]
  $region18: #{tpu_custom_call.1} parent=0
    _
  %s4 = ssub.s32 1, %s2
  %s5 = scalar_select 0, %s4, %s2
  $region1: #{tpu_custom_call.1} parent=0
    #allocation2 [shape = 'u8[8192]{0}', space=vmem, size = 0x2000, scoped, tag = 'input window, operand 0, single buffered']
    #allocation3 [shape = 's32[1]{0}', space=sflag, size = 0x4, scoped, tag = 'scoped memory for tpu_custom_call.1']
    #allocation4 [shape = 's32[1]{0}', space=sflag, size = 0x4, scoped, tag = 'scoped memory for tpu_custom_call.1']
    #allocation5 [shape = 'u8[8192]{0}', space=vmem, size = 0x2000, scoped, tag = 'output window, operand 0, single buffered']
    %6 = vsyncpa [#allocation3], 0
    %7 = vsyncpa [#allocation4], 0
    // Predicated region
    $region2: #{tpu_custom_call.1} parent=1 // pred_check
      _
    $region3: #{tpu_custom_call.1} parent=1 // pred_check_branch
      %9 = sbr.rel (0) target = $region5
    $region4: #{tpu_custom_call.1} parent=1 // pred_region
      %s11 = ssub.s32 256, 256
      %12 = vsyncadd [#allocation3], %s11
      %s14 = sshll.u32 [#allocation2], 4
      %s15 = int_to_ptr.vmem [resolvable:$true] %s14
      %17 = dma.hbm_to_vmem [thread:$0]  %s0, 256, %s15, [#allocation3]
    $region5: #{tpu_custom_call.1} parent=1 // pred_fallthru
      _
    // Predicated region
    $region6: #{tpu_custom_call.1} parent=1 // pred_check
      _
    $region7: #{tpu_custom_call.1} parent=1 // pred_check_branch
      %19 = sbr.rel (0) target = $region9
    $region8: #{tpu_custom_call.1} parent=1 // pred_region
      %20 = dma.done [#allocation3], 256
    $region9: #{tpu_custom_call.1} parent=1 // pred_fallthru
      _
    %v21 = vld [vmem:[#allocation2] sm:$0xff]
    %v22 = vld [vmem:[#allocation2 + $0x8] sm:$0xff]
    %v23 = vxor.u32 %v21, 2147483648
    %v24 = vxor.u32 %v22, 2147483648
    %v25 = vmul.f32 %v23, 1.442695
    %v26 = vpow.pop %v25
    %v27 = vmul.f32 %v24, 1.442695
    %v28 = vpow.pop %v27
    %v29 = vadd.f32 %v26, 1.0
    %v30 = vadd.f32 %v28, 1.0
    %v31 = vrcp.pop %v29
    %v32 = vmul.f32 1.0, %v31
    %v33 = vrcp.pop %v30
    %v34 = vmul.f32 1.0, %v33
    %v35 = vmul.f32 %v32, 2.0
    %v36 = vmul.f32 %v34, 2.0
    %v37 = vadd.f32 %v35, -1.0
    %v38 = vadd.f32 %v36, -1.0
    %39 = vst [vmem:[#allocation5] sm:$0xff] %v37
    %40 = vst [vmem:[#allocation5 + $0x8] sm:$0xff] %v38
    // Predicated region
    $region10: #{tpu_custom_call.1} parent=1 // pred_check
      _
    $region11: #{tpu_custom_call.1} parent=1 // pred_check_branch
      %42 = sbr.rel (0) target = $region13
    $region12: #{tpu_custom_call.1} parent=1 // pred_region
      %s44 = ssub.s32 256, 256
      %45 = vsyncadd [#allocation4], %s44
      %s47 = sshll.u32 [#allocation5], 4
      %s48 = int_to_ptr.vmem [resolvable:$true] %s47
      %50 = dma.vmem_to_hbm [thread:$0]  %s48, 256, %s1, [#allocation4]
    $region13: #{tpu_custom_call.1} parent=1 // pred_fallthru
      _
    // Predicated region
    $region14: #{tpu_custom_call.1} parent=1 // pred_check
      _
    $region15: #{tpu_custom_call.1} parent=1 // pred_check_branch
      %52 = sbr.rel (0) target = $region17
    $region16: #{tpu_custom_call.1} parent=1 // pred_region
      %53 = dma.done [#allocation4], 256
    $region17: #{tpu_custom_call.1} parent=1 // pred_fallthru
      _
    %54 = vsyncpa [#allocation3], 1
    %55 = vsyncpa [#allocation4], 1

</llo_original>
